<compile_context>
chip_gen: v7x
topology: tpu7x:2x2x1
jax: 0.10.0
libtpu: 0.0.40
codegen_flags: <defaults>
</compile_context>

<pallas_src>
from functools import partial

import jax
import jax.numpy as jnp
from jax.experimental import pallas as pl
from jax.experimental.pallas import tpu as pltpu


def _round_up(x, m):
    return (x + m - 1) // m * m


def _patch_embed_kernel(x_ref, w_ref, b_ref, o_ref):
    # x_ref: [TM, K]  bf16 patch tile (streamed over the inner M grid axis)
    # w_ref: [K, TN]  bf16 projection weight (VMEM-resident, or N-tiled block)
    # b_ref: [1, TN]  f32 bias
    # o_ref: [TM, TN] output tile (f32 or bf16)
    acc = jnp.dot(x_ref[...], w_ref[...], preferred_element_type=jnp.float32)
    o_ref[...] = (acc + b_ref[...]).astype(o_ref.dtype)


def _vmem_budget():
    """(tile budget bytes, scoped-vmem limit bytes), per chip generation.

    128-MiB parts (v5e/v6e) get a larger budget; the conservative default is
    sized for v7x's 64 MiB physical VMEM and for when the query is unavailable.
    """
    try:
        cap = int(pltpu.get_tpu_info().vmem_capacity_bytes)
    except Exception:
        cap = 64 << 20
    if cap >= (100 << 20):          # v5e / v6e: 128 MiB physical VMEM
        return 48 << 20, 64 << 20
    return 24 << 20, 32 << 20       # v7x / unknown: stay well inside 64 MiB


def _choose_tiles(M, K, N, budget, out_bytes):
    """Pick (TM, TN, weight_resident) under a VMEM budget.

    Resident fast path: single-buffered full [K, N] bf16 weight (+ bias).
    Fallback for very large embed dims: tile N with double-buffered weight
    blocks.  Streamed patch / output tiles are double-buffered in both cases.
    """
    in_b = 2  # bf16 activations / weight
    m8 = _round_up(M, 8)

    w_bytes = K * N * in_b + N * 4
    resident = w_bytes <= budget // 2
    if resident:
        tn = N
        fixed = w_bytes
    else:
        # N-tiling fallback: 2 buffers of (K, tn) weight must fit half the budget.
        tn = (budget // 2) // (2 * K * in_b)
        tn = max(128, min(tn // 128 * 128, _round_up(N, 128)))
        fixed = 2 * (K * tn * in_b + tn * 4)

    per_row = 2 * (K * in_b + tn * out_bytes)   # double-buffered patch row + out row
    tm = max(8, (budget - fixed) // per_row)
    tm = min(tm, 1024, m8)
    # Keep >= ~4 M tiles so the v7x 2-TC "parallel" split has work for both cores.
    tm = min(tm, _round_up(pl.cdiv(m8, 4), 8))
    tm = max(8, tm // 8 * 8)
    return int(tm), int(tn), resident


@partial(jax.jit, static_argnames=("patch_size", "out_dtype", "tm"))
def patch_embedding(x, weight, bias, *, patch_size, out_dtype=None, tm=None):
    """Pallas implementation of PatchEmbedding.forward.

    Args:
      x:          [B, C, H, W] float32 (NCHW, like PyTorch)
      weight:     [embed_dim, C, P, P] (PyTorch Conv2d weight layout)
      bias:       [embed_dim]
      patch_size: int P
      out_dtype:  optional output dtype (default: x.dtype; pass jnp.bfloat16 to
                  halve output writeback bytes when downstream is bf16)
      tm:         optional M-tile override (None -> auto-sized)
    Returns:
      [B, num_patches, embed_dim] in out_dtype
    """
    B, C, H, W = x.shape
    P = patch_size
    assert H % P == 0 and W % P == 0
    E = weight.shape[0]
    nph, npw = H // P, W // P
    num_patches = nph * npw

    M, K, N = B * num_patches, C * P * P, E
    out_dtype = x.dtype if out_dtype is None else jnp.dtype(out_dtype)
    out_itemsize = jnp.dtype(out_dtype).itemsize

    # --- glue: im2col in (C, kh, kw) order to match the Conv2d weight layout.
    # bf16 cast happens *before* the transpose (halves the transpose's bytes);
    # with allow_input_fusion below XLA may fuse this producer straight into
    # the pallas_call operand, skipping the HBM intermediate entirely.
    # TODO(synk): fully fuse patch extraction into the kernel (memory_space=ANY
    # + manual make_async_copy of contiguous [C, P, W] slabs + in-VMEM
    # reshuffle) so the single f32 read of x is the only input-side HBM traffic.
    patches = (
        x.astype(jnp.bfloat16)
        .reshape(B, C, nph, P, npw, P)
        .transpose(0, 2, 4, 1, 3, 5)
        .reshape(M, K)
    )
    w_mat = weight.reshape(E, K).T.astype(jnp.bfloat16)   # [K, N]
    b_mat = bias.reshape(1, N).astype(jnp.float32)        # [1, N]

    budget, vmem_limit = _vmem_budget()
    auto_tm, tn, resident = _choose_tiles(M, K, N, budget, out_itemsize)
    tm = auto_tm if tm is None else max(8, min(int(tm) // 8 * 8, _round_up(M, 8)))

    nn = pl.cdiv(N, tn)
    nm = pl.cdiv(M, tm)
    # N tiles outer (weight block revisited / resident), M tiles inner (streamed).
    grid = (nn, nm)

    if resident:
        # Whole array in VMEM, copied once, single-buffered (no pipeline).
        w_spec = pl.BlockSpec(memory_space=pltpu.MemorySpace.VMEM)
        b_spec = pl.BlockSpec(memory_space=pltpu.MemorySpace.VMEM)
    else:
        w_spec = pl.BlockSpec((K, tn), lambda j, i: (0, j))
        b_spec = pl.BlockSpec((1, tn), lambda j, i: (0, j))

    flops = 2 * M * K * N
    bytes_accessed = nn * M * K * 2 + K * N * 2 + N * 4 + M * N * out_itemsize

    out = pl.pallas_call(
        _patch_embed_kernel,
        out_shape=jax.ShapeDtypeStruct((M, N), out_dtype),
        grid_spec=pl.GridSpec(
            grid=grid,
            in_specs=[
                pl.BlockSpec((tm, K), lambda j, i: (i, 0)),   # streamed patch tiles
                w_spec,
                b_spec,
            ],
            out_specs=pl.BlockSpec((tm, tn), lambda j, i: (i, j)),
        ),
        compiler_params=pltpu.CompilerParams(
            dimension_semantics=("parallel", "parallel"),     # megacore / 2-TC split
            vmem_limit_bytes=vmem_limit,
            allow_input_fusion=[True, False, False],          # fuse im2col producer
        ),
        cost_estimate=pl.CostEstimate(
            flops=int(flops), transcendentals=0, bytes_accessed=int(bytes_accessed)
        ),
    )(patches, w_mat, b_mat)

    return out.reshape(B, num_patches, E)


if __name__ == "__main__":
    # Small shapes consistent with the module:
    #   img_size=16, patch_size=4, in_channels=4, embed_dim=32, batch=2
    B, C, IMG, P, E = 2, 4, 16, 4, 32

    key = jax.random.PRNGKey(0)
    kx, kw, kb = jax.random.split(key, 3)

    x = jax.random.normal(kx, (B, C, IMG, IMG), dtype=jnp.float32)
    fan_in = C * P * P
    weight = jax.random.normal(kw, (E, C, P, P), dtype=jnp.float32) / jnp.sqrt(fan_in)
    bias = jax.random.normal(kb, (E,), dtype=jnp.float32) * 0.01

    # Pure-JAX f32 reference of the same math.
    nph = IMG // P
    patches_ref = x.reshape(B, C, nph, P, nph, P).transpose(0, 2, 4, 1, 3, 5)
    patches_ref = patches_ref.reshape(B, nph * nph, C * P * P)
    ref = patches_ref @ weight.reshape(E, -1).T + bias

    # Auto-tiled run (grid depth forced to ~4 M tiles -> exercises pipelining).
    out = jax.block_until_ready(patch_embedding(x, weight, bias, patch_size=P))
    assert out.shape == (B, nph * nph, E) and out.dtype == x.dtype
    # bf16 inputs with f32 accumulation -> tolerance reflects bf16 mantissa.
    assert jnp.allclose(out, ref, atol=2e-2, rtol=2e-2), float(jnp.max(jnp.abs(out - ref)))

    # Forced tm=24 on M=32 -> ragged last M block (masked partial-block path).
    out_partial = jax.block_until_ready(
        patch_embedding(x, weight, bias, patch_size=P, tm=24)
    )
    assert jnp.allclose(out_partial, ref, atol=2e-2, rtol=2e-2)

    # bf16 output path (f32 accumulation + bias add retained in-kernel).
    out_bf16 = jax.block_until_ready(
        patch_embedding(x, weight, bias, patch_size=P, out_dtype=jnp.bfloat16)
    )
    assert out_bf16.dtype == jnp.bfloat16
    assert jnp.allclose(out_bf16.astype(jnp.float32), ref, atol=3e-2, rtol=3e-2)

    print("KERNEL_OK")
</pallas_src>

<mosaic_0001>
module attributes {stable_mosaic.version = 11 : i64} {
  func.func @_patch_embed_kernel(%arg0: i32, %arg1: i32, %arg2: memref<8x64xbf16, #tpu.memory_space<vmem>>, %arg3: memref<64x32xbf16, #tpu.memory_space<vmem>>, %arg4: memref<1x32xf32, #tpu.memory_space<vmem>>, %arg5: memref<8x32xf32, #tpu.memory_space<vmem>>) attributes {dimension_semantics = [#tpu.dimension_semantics<parallel>, #tpu.dimension_semantics<parallel>], iteration_bounds = array<i64: 1, 4>, scalar_prefetch = 0 : i64, scratch_operands = 0 : i64, tpu.core_type = #tpu.core_type<tc>, window_params = [{transform_indices = @transform_0, window_bounds = array<i64: 8, 64>}, {pipeline_mode = #tpu.pipeline_mode<synchronous>, transform_indices = @transform_1, window_bounds = array<i64: 64, 32>}, {pipeline_mode = #tpu.pipeline_mode<synchronous>, transform_indices = @transform_2, window_bounds = array<i64: 1, 32>}, {transform_indices = @transform_3, window_bounds = array<i64: 8, 32>}]} {
    %c0 = arith.constant 0 : index
    %c0_0 = arith.constant 0 : index
    %0 = vector.load %arg2[%c0, %c0_0] : memref<8x64xbf16, #tpu.memory_space<vmem>>, vector<8x64xbf16>
    %c0_1 = arith.constant 0 : index
    %c0_2 = arith.constant 0 : index
    %1 = vector.load %arg3[%c0_1, %c0_2] : memref<64x32xbf16, #tpu.memory_space<vmem>>, vector<64x32xbf16>
    %cst = arith.constant dense<0.000000e+00> : vector<8x32xf32>
    %2 = tpu.matmul %0, %1, %cst {dimension_numbers = #tpu.dot_dimension_numbers<[1], [0], [0], [1], [0, 0, 1, 1], [], []>} : vector<8x64xbf16>, vector<64x32xbf16>, vector<8x32xf32> -> vector<8x32xf32>
    %c0_3 = arith.constant 0 : index
    %c0_4 = arith.constant 0 : index
    %3 = vector.load %arg4[%c0_3, %c0_4] : memref<1x32xf32, #tpu.memory_space<vmem>>, vector<1x32xf32>
    %4 = vector.broadcast %3 : vector<1x32xf32> to vector<8x32xf32>
    %5 = arith.addf %2, %4 : vector<8x32xf32>
    %c0_5 = arith.constant 0 : index
    %c0_6 = arith.constant 0 : index
    %6 = vector.load %arg5[%c0_5, %c0_6] : memref<8x32xf32, #tpu.memory_space<vmem>>, vector<8x32xf32>
    tpu.vector_store %arg5[%c0_5, %c0_6], %5 {strides = array<i32>} : memref<8x32xf32, #tpu.memory_space<vmem>>, vector<8x32xf32>,
    return
  }
  func.func @transform_0(%arg0: i32, %arg1: i32) -> (i32, i32) {
    %c0_i32 = arith.constant 0 : i32
    %c0_i32_0 = arith.constant 0 : i32
    return %arg1, %c0_i32 : i32, i32
  }
  func.func @transform_1(%arg0: i32, %arg1: i32) -> (i32, i32) {
    %c0_i32 = arith.constant 0 : i32
    %c0_i32_0 = arith.constant 0 : i32
    %c0_i32_1 = arith.constant 0 : i32
    return %c0_i32, %c0_i32_0 : i32, i32
  }
  func.func @transform_2(%arg0: i32, %arg1: i32) -> (i32, i32) {
    %c0_i32 = arith.constant 0 : i32
    %c0_i32_0 = arith.constant 0 : i32
    %c0_i32_1 = arith.constant 0 : i32
    return %c0_i32, %c0_i32_0 : i32, i32
  }
  func.func @transform_3(%arg0: i32, %arg1: i32) -> (i32, i32) {
    %c0_i32 = arith.constant 0 : i32
    return %arg1, %arg0 : i32, i32
  }
}

</mosaic_0001>

<llo_original>
// kernel: patch_embedding.1
$region0: #{patch_embedding.1}
  #allocation0 [shape = 'u32[]', space=smem, size = 0x4, offset = 0x4, fixed_abs, tag = 'smem constant byte address 0x4 - core index']
  #allocation1 [shape = 'u32[144,128]{1,0:T(1,128)}', space=vmem, size = 0x12000, scoped, tag = 'internal scratch']
  %s0 = inlined_call_operand.vmem [shape: bf16[32,64], index: 0, kind: input, shape index: {}]
  %s1 = inlined_call_operand.vmem [shape: bf16[64,32], index: 1, kind: input, shape index: {}]
  %s2 = inlined_call_operand.vmem [shape: f32[1,32], index: 2, kind: input, shape index: {}]
  %s3 = inlined_call_operand.hbm [shape: f32[32,32], index: 3, kind: output, shape index: {}]
  %s4 = sld [smem:[#allocation0]]
  $region45: #{patch_embedding.1} parent=0
    _
  %s6 = ssub.s32 1, %s4
  %s7 = scalar_select 0, %s6, %s4
  $region1: #{patch_embedding.1} parent=0
    #allocation2 [shape = 'u8[8192]{0}', space=vmem, size = 0x2000, scoped, tag = 'output window, operand 0']
    #allocation3 [shape = 's32[2]{0}', space=sflag, size = 0x8, scoped, tag = 'scoped memory for patch_embedding.1']
    %8 = vsyncpa [#allocation3], 0
    %s9 = scalar_lea.sflag [#allocation3], 1
    %10 = vsyncpa %s9, 0
    loop: start=0, step=1, limit=6
    $region2: #{patch_embedding.1} parent=1 // loop_pre_header
      _
    $region3: #{patch_embedding.1} parent=1 // loop_header
      %s12 = sphi 0, %s16
      %p13 = scmp.ge.s32.totalorder %s12, 6
      %s19 = sphi 0, %s31
      %s20 = sphi 0, %s27
      %s21 = sphi 0, %s19
      %s22 = sphi 0, %s20
      %s23 = sphi 0, %s21
      %s24 = sphi 0, %s22
      %s34 = sphi 0, %s36
      %s37 = sphi 0, %s34
      %s38 = sphi 0, %s37
      %s54 = sphi 0, %s38
      %s58 = sphi 0, %s58
      %s60 = sphi 0, %s58
      %s61 = sphi 0, %s60
      %s75 = sphi 0, %s61
      %s79 = sphi 0, %s79
      %s81 = sphi 0, %s79
      %s82 = sphi 0, %s81
      %s96 = sphi 0, %s82
      %s104 = sphi 0, %s106
      %s107 = sphi 0, %s104
      %s108 = sphi 0, %s107
      %s124 = sphi 0, %s108
    $region4: #{patch_embedding.1} parent=1 // loop_header_branch
      %15 = sbr.rel (%p13) target = $region8
    $region5: #{patch_embedding.1} parent=1 // loop_body
      %s17 = ssub.s32 %s12, 1
      %s18 = ssub.s32 %s12, 2
      %s25 = sadd.s32 1, %s20
      %p26 = scmp.ge.s32.totalorder %s25, 4
      %s27 = scalar_select %p26, 0, %s25
      %s28 = sadd.s32 1, %s19
      %s29 = scalar_select %p26, %s28, %s19
      %p30 = scmp.ge.s32.totalorder %s29, 1
      %s31 = scalar_select %p30, 0, %s29
      %s32 = ssub.s32 %s20, %s27
      %p33 = scmp.eq.s32.totalorder %s32, 0
      %s35 = sadd.s32 %s34, 1
      %s36 = scalar_select %p33, %s34, %s35
      %p39 = pneg %p33
      %p40 = scmp.eq.s32.totalorder %s12, 3
      %p41 = por %p39, %p40
      %p42 = scmp.ne.s32.totalorder %s34, %s37
      %p43 = scmp.eq.s32.totalorder %s12, 0
      %p44 = por %p42, %p43
      %p45 = scmp.ne.s32.totalorder %s34, %s37
      %p46 = scmp.eq.s32.totalorder %s17, 3
      %p47 = por %p45, %p46
      %p48 = scmp.ne.s32.totalorder %s37, %s38
      %p49 = scmp.eq.s32.totalorder %s17, 0
      %p50 = por %p48, %p49
      %p51 = scmp.ne.s32.totalorder %s37, %s38
      %p52 = scmp.eq.s32.totalorder %s18, 3
      %p53 = por %p51, %p52
      %p55 = scmp.ne.s32.totalorder %s38, %s54
      %p56 = scmp.eq.s32.totalorder %s18, 0
      %p57 = por %p55, %p56
      %s59 = sadd.s32 %s58, 1
      %p62 = scmp.eq.s32.totalorder %s12, 3
      %p63 = scmp.ne.s32.totalorder %s58, %s60
      %p64 = scmp.eq.s32.totalorder %s12, 0
      %p65 = por %p63, %p64
      %p66 = scmp.ne.s32.totalorder %s58, %s60
      %p67 = scmp.eq.s32.totalorder %s17, 3
      %p68 = por %p66, %p67
      %p69 = scmp.ne.s32.totalorder %s60, %s61
      %p70 = scmp.eq.s32.totalorder %s17, 0
      %p71 = por %p69, %p70
      %p72 = scmp.ne.s32.totalorder %s60, %s61
      %p73 = scmp.eq.s32.totalorder %s18, 3
      %p74 = por %p72, %p73
      %p76 = scmp.ne.s32.totalorder %s61, %s75
      %p77 = scmp.eq.s32.totalorder %s18, 0
      %p78 = por %p76, %p77
      %s80 = sadd.s32 %s79, 1
      %p83 = scmp.eq.s32.totalorder %s12, 3
      %p84 = scmp.ne.s32.totalorder %s79, %s81
      %p85 = scmp.eq.s32.totalorder %s12, 0
      %p86 = por %p84, %p85
      %p87 = scmp.ne.s32.totalorder %s79, %s81
      %p88 = scmp.eq.s32.totalorder %s17, 3
      %p89 = por %p87, %p88
      %p90 = scmp.ne.s32.totalorder %s81, %s82
      %p91 = scmp.eq.s32.totalorder %s17, 0
      %p92 = por %p90, %p91
      %p93 = scmp.ne.s32.totalorder %s81, %s82
      %p94 = scmp.eq.s32.totalorder %s18, 3
      %p95 = por %p93, %p94
      %p97 = scmp.ne.s32.totalorder %s82, %s96
      %p98 = scmp.eq.s32.totalorder %s18, 0
      %p99 = por %p97, %p98
      %s100 = ssub.s32 %s20, %s27
      %s101 = ssub.s32 %s19, %s31
      %s102 = sor.u32 %s100, %s101
      %p103 = scmp.eq.s32.totalorder %s102, 0
      %s105 = sadd.s32 %s104, 1
      %s106 = scalar_select %p103, %s104, %s105
      %p109 = pneg %p103
      %p110 = scmp.eq.s32.totalorder %s12, 3
      %p111 = por %p109, %p110
      %p112 = scmp.ne.s32.totalorder %s104, %s107
      %p113 = scmp.eq.s32.totalorder %s12, 0
      %p114 = por %p112, %p113
      %p115 = scmp.ne.s32.totalorder %s104, %s107
      %p116 = scmp.eq.s32.totalorder %s17, 3
      %p117 = por %p115, %p116
      %p118 = scmp.ne.s32.totalorder %s107, %s108
      %p119 = scmp.eq.s32.totalorder %s17, 0
      %p120 = por %p118, %p119
      %p121 = scmp.ne.s32.totalorder %s107, %s108
      %p122 = scmp.eq.s32.totalorder %s18, 3
      %p123 = por %p121, %p122
      %p125 = scmp.ne.s32.totalorder %s108, %s124
      %p126 = scmp.eq.s32.totalorder %s18, 0
      %p127 = por %p125, %p126
      %p128 = scmp.le.s32.totalorder 1, %s12
      %p129 = scmp.lt.s32.totalorder %s12, 5
      %p130 = pnand %p128, %p129
      %p131 = pneg %p130
      // Predicated region
      $region9: #{patch_embedding.1} parent=5 // pred_check
        _
      $region10: #{patch_embedding.1} parent=5 // pred_check_branch
        %133 = sbr.rel (%p130) target = $region12
      $region11: #{patch_embedding.1} parent=5 // pred_region
        %s134 = ssub.s32 %s12, 1
        // Predicated region
        $region13: #{patch_embedding.1} parent=11 // pred_check
          %p135 = pneg %p71
        $region14: #{patch_embedding.1} parent=11 // pred_check_branch
          %137 = sbr.rel (%p135) target = $region16
        $region15: #{patch_embedding.1} parent=11 // pred_region
          _
        $region16: #{patch_embedding.1} parent=11 // pred_fallthru
          _
        // Predicated region
        $region17: #{patch_embedding.1} parent=11 // pred_check
          %p138 = pneg %p92
        $region18: #{patch_embedding.1} parent=11 // pred_check_branch
          %140 = sbr.rel (%p138) target = $region20
        $region19: #{patch_embedding.1} parent=11 // pred_region
          _
        $region20: #{patch_embedding.1} parent=11 // pred_fallthru
          _
      $region12: #{patch_embedding.1} parent=5 // pred_fallthru
        _
      %p141 = scmp.lt.s32.totalorder %s12, 4
      // Predicated region
      $region21: #{patch_embedding.1} parent=5 // pred_check
        %p142 = pneg %p141
      $region22: #{patch_embedding.1} parent=5 // pred_check_branch
        %144 = sbr.rel (%p142) target = $region24
      $region23: #{patch_embedding.1} parent=5 // pred_region
        // Predicated region
        $region25: #{patch_embedding.1} parent=23 // pred_check
          %p145 = pneg %p44
        $region26: #{patch_embedding.1} parent=23 // pred_check_branch
          %147 = sbr.rel (%p145) target = $region28
        $region27: #{patch_embedding.1} parent=23 // pred_region
          %p148 = scmp.lt.s32.totalorder %s20, 3
          %s149 = scalar_select %p148, %s20, 3
          %s150 = smul.addr %s149, 4
          %s151 = scalar_lea.vmem %s0, %s150
        $region28: #{patch_embedding.1} parent=23 // pred_fallthru
          _
      $region24: #{patch_embedding.1} parent=5 // pred_fallthru
        _
      %p152 = scmp.le.s32.totalorder 1, %s12
      %p153 = scmp.lt.s32.totalorder %s12, 5
      %p154 = pnand %p152, %p153
      %p155 = pneg %p154
      // Predicated region
      $region29: #{patch_embedding.1} parent=5 // pred_check
        _
      $region30: #{patch_embedding.1} parent=5 // pred_check_branch
        %157 = sbr.rel (%p154) target = $region32
      $region31: #{patch_embedding.1} parent=5 // pred_region
        %s158 = ssub.s32 %s12, 1
        %p159 = scmp.lt.s32.totalorder %s22, 3
        %s160 = scalar_select %p159, %s22, 3
        %s161 = smul.addr %s160, 4
        %s162 = scalar_lea.vmem %s0, %s161
        %p163 = pneg %p50
        %p164 = pneg %p47
        %p165 = pneg %p71
        %p166 = pneg %p68
        %p167 = pneg %p92
        %p168 = pneg %p89
        %p169 = pneg %p120
        %p170 = pneg %p117
        %s171 = sand.u32 %s107, 1
        %s172 = scalar_lea.sflag [#allocation3], %s171
        %s173 = sand.u32 %s107, 1
        %s174 = smul.addr %s173, 8
        %s175 = scalar_lea.vmem [#allocation2], %s174
        %p176 = scmp.lt.s32.totalorder %s22, 3
        %s177 = scalar_select %p176, %s22, 3
        %s178 = smul.addr %s177, 4
        %s179 = scalar_lea.vmem %s0, %s178
        %v181 = vld [vmem:[%s179] sm:$0xf]
        %v182 = vld [vmem:[%s1] sm:$0xf]
        %v183 = vld [vmem:[%s1 + $0x4] sm:$0xf]
        %v184 = vld [vmem:[%s1 + $0x8] sm:$0xf]
        %v185 = vld [vmem:[%s1 + $0xc] sm:$0xf]
        %v186 = vld [vmem:[%s1 + $0x10] sm:$0xf]
        %v187 = vld [vmem:[%s1 + $0x14] sm:$0xf]
        %v188 = vld [vmem:[%s1 + $0x18] sm:$0xf]
        %v189 = vld [vmem:[%s1 + $0x1c] sm:$0xf]
        %v190 = vld [vmem:[%s2] sm:$0x1]
        %v192 = vlaneseq
        %v193 = vshrl.u32 %v192, 7
        %v194 = vsub.s32 0, %v193
        %v195 = vrot.slane %v190, %v194
        %v205 = vunpack.c.l.b16 %v182
        %v206 = vunpack.c.l.b16 %v183
        %v207 = vunpack.c.l.b16 %v184
        %v208 = vunpack.c.l.b16 %v185
        %v209 = vunpack.c.l.b16 %v186
        %v210 = vunpack.c.l.b16 %v187
        %v211 = vunpack.c.l.b16 %v188
        %v212 = vunpack.c.l.b16 %v189
        %v213 = vpack.c.b16 %v206, %v205
        %v214 = vpack.c.b16 %v208, %v207
        %v215 = vpack.c.b16 %v210, %v209
        %v216 = vpack.c.b16 %v212, %v211
        %vm221 = vcmask 523264
        %v223 = vsel %vm221, %v181, 0
        %225 = vmatprep.subr.bf16.mxu0 0
        %226 = vmatpush1.bf16.msra.mxu0 %v213
        %227 = vmatprep.subr.bf16.mxu0 0
        %228 = vmatpush1.bf16.msra.mxu0 %v214
        %229 = vmatprep.subr.bf16.mxu0 0
        %230 = vmatpush1.bf16.msra.mxu0 %v215
        %231 = vmatprep.subr.bf16.mxu0 0
        %232 = vmatpush1.bf16.msra.mxu0 %v216
        %233 = vmatprep.subr.bf16.mxu0 0
        %234 = vmatpush1.bf16.msra.mxu0 0
        %235 = vmatprep.subr.bf16.mxu0 0
        %236 = vmatpush1.bf16.msra.mxu0 0
        %237 = vmatprep.subr.bf16.mxu0 0
        %238 = vmatpush1.bf16.msra.mxu0 0
        %239 = vmatprep.subr.bf16.mxu0 0
        %240 = vmatpush1.bf16.msra.mxu0 0
        %241 = vmatprep.subr.bf16.mxu0 0
        %242 = vmatpush1.bf16.msra.mxu0 0
        %243 = vmatprep.subr.bf16.mxu0 0
        %244 = vmatpush1.bf16.msra.mxu0 0
        %245 = vmatprep.subr.bf16.mxu0 0
        %246 = vmatpush1.bf16.msra.mxu0 0
        %247 = vmatprep.subr.bf16.mxu0 0
        %248 = vmatpush1.bf16.msra.mxu0 0
        %249 = vmatprep.subr.bf16.mxu0 0
        %250 = vmatpush1.bf16.msra.mxu0 0
        %251 = vmatprep.subr.bf16.mxu0 0
        %252 = vmatpush1.bf16.msra.mxu0 0
        %253 = vmatprep.subr.bf16.mxu0 0
        %254 = vmatpush1.bf16.msra.mxu0 0
        %255 = vmatprep.subr.bf16.mxu0 0
        %256 = vmatpush1.bf16.msra.mxu0 0
        %257 = vmatprep.mubr.bf16.mxu0 0
        %258 = vmatmul.mubr.bf16.gmra.mrb[0].mxu0 %v223
        %v259 = vpop.f32.mrb[0].mxu0
        %v260 = vadd.f32 %v195, %v259
        %v261 = vpop.f32.mrb[0].mxu0
        %v262 = vpop.f32.mrb[0].mxu0
        %v263 = vpop.f32.mrb[0].mxu0
        %264 = vdwg.mxu0
        %vm265 = vcmask 261120
        %266 = vst.msk [vmem:[%s175] sm:$0xff] %vm265, %v260
        %s267 = sand.u32 %s107, 1
        %s268 = scalar_lea.sflag [#allocation3], %s267
        %s269 = sand.u32 %s107, 1
        %s270 = smul.addr %s269, 8
        %s271 = scalar_lea.vmem [#allocation2], %s270
        // Predicated region
        $region33: #{patch_embedding.1} parent=31 // pred_check
          %p272 = pneg %p117
        $region34: #{patch_embedding.1} parent=31 // pred_check_branch
          %274 = sbr.rel (%p272) target = $region36
        $region35: #{patch_embedding.1} parent=31 // pred_region
          %s276 = ssub.s32 128, 128
          %277 = vsyncadd %s268, %s276
          %s278 = sadd.s32 %s21, %s22
          %s279 = smul.addr %s278, 128
          %s280 = scalar_lea.hbm %s3, %s279
          %s282 = sshll.u32 %s271, 4
          %s283 = int_to_ptr.vmem [resolvable:$true] %s282
          %285 = dma.vmem_to_hbm [thread:$0]  %s283, 128, %s280, %s268
        $region36: #{patch_embedding.1} parent=31 // pred_fallthru
          _
      $region32: #{patch_embedding.1} parent=5 // pred_fallthru
        _
      %p286 = scmp.le.s32.totalorder 2, %s12
      // Predicated region
      $region37: #{patch_embedding.1} parent=5 // pred_check
        %p287 = pneg %p286
      $region38: #{patch_embedding.1} parent=5 // pred_check_branch
        %289 = sbr.rel (%p287) target = $region40
      $region39: #{patch_embedding.1} parent=5 // pred_region
        %s290 = ssub.s32 %s12, 2
        // Predicated region
        $region41: #{patch_embedding.1} parent=39 // pred_check
          %p291 = pneg %p123
        $region42: #{patch_embedding.1} parent=39 // pred_check_branch
          %293 = sbr.rel (%p291) target = $region44
        $region43: #{patch_embedding.1} parent=39 // pred_region
          %s294 = sand.u32 %s108, 1
          %s295 = scalar_lea.sflag [#allocation3], %s294
          %s296 = sand.u32 %s108, 1
          %s297 = smul.addr %s296, 8
          %s298 = scalar_lea.vmem [#allocation2], %s297
          %299 = dma.done %s295, 128
        $region44: #{patch_embedding.1} parent=39 // pred_fallthru
          _
      $region40: #{patch_embedding.1} parent=5 // pred_fallthru
        _
    $region6: #{patch_embedding.1} parent=1 // loop_footer
      %s16 = sadd.s32 1, %s12
    $region7: #{patch_embedding.1} parent=1 // loop_footer_branch
      %11 = sbr.rel target = $region3
    $region8: #{patch_embedding.1} parent=1 // loop_exit
      _
    %300 = vsyncpa [#allocation3], 1
    %s301 = scalar_lea.sflag [#allocation3], 1
    %302 = vsyncpa %s301, 1

</llo_original>
